<compile_context>
chip_gen: v6e
topology: v6e:2x2x1
jax: 0.10.0
libtpu: 0.0.40
codegen_flags: <defaults>
</compile_context>

<pallas_src>
import jax
import jax.numpy as jnp
from jax.experimental import pallas as pl
from jax.experimental.pallas import tpu as pltpu


def _round_up(a: int, m: int) -> int:
    return ((a + m - 1) // m) * m


def hnn_kernel(x_ref, w1t_ref, b1_ref, w1eff_ref, o_ref):
    x = x_ref[...]                                   # [TM, D]  native batch-major tile
    # Encoder: pre = x @ W1.T + b1  -> [TM, H]      (MXU, K = D = 3; bias add on VPU)
    pre = jnp.dot(x, w1t_ref[...], preferred_element_type=jnp.float32) + b1_ref[...]
    z = jnp.tanh(pre)                                # [TM, H]  (EUP)
    s = 1.0 - z * z                                  # [TM, H]  (VPU)
    # out = x + (1 - z^2) @ (0.05 * w2 * W1) -> [TM, D]   (MXU, K = H = 64)
    o_ref[...] = x + jnp.dot(s, w1eff_ref[...], preferred_element_type=jnp.float32)


def simple_hnn_forward(x, w1, b1, w2, *, tm=None):
    """x: [B, D]; w1: [H, D]; b1: [H]; w2: [1, H] or [H].  Returns [B, D] f32."""
    B, D = x.shape
    H = w1.shape[0]

    if tm is None:
        # Batch rows per grid step: large enough to amortize the ~0.35 us/step
        # pipeline overhead, small enough to keep the [TM, H] f32 intermediates
        # (~2 MiB each at TM=8192) well inside the 32 MiB scoped VMEM, and split
        # into >= 2 steps once B > 128 so v7x's two TensorCores both get work.
        half = _round_up(pl.cdiv(B, 2), 128)
        tm = int(min(8192, max(128, half)))

    n_tiles = pl.cdiv(B, tm)

    x = x.astype(jnp.float32)                                 # [B, D]
    w1 = w1.astype(jnp.float32)                               # [H, D]
    w1t = w1.T                                                # [D, H]
    b1_row = b1.reshape(1, H).astype(jnp.float32)             # [1, H]
    # Fold the hamiltonian weight w2 and the 0.05 step into the grad matmul weight.
    w1_eff = 0.05 * w2.reshape(H, 1).astype(jnp.float32) * w1  # [H, D]

    return pl.pallas_call(
        hnn_kernel,
        out_shape=jax.ShapeDtypeStruct((B, D), jnp.float32),
        grid=(n_tiles,),
        in_specs=[
            pl.BlockSpec((tm, D), lambda i: (i, 0)),   # x tile (double-buffered)
            pl.BlockSpec((D, H), lambda i: (0, 0)),    # W1.T        (resident)
            pl.BlockSpec((1, H), lambda i: (0, 0)),    # b1          (resident)
            pl.BlockSpec((H, D), lambda i: (0, 0)),    # 0.05*w2*W1  (resident)
        ],
        out_specs=pl.BlockSpec((tm, D), lambda i: (i, 0)),
        compiler_params=pltpu.CompilerParams(
            dimension_semantics=("parallel",),          # megacore sharding on v7x
            vmem_limit_bytes=32 * 1024 * 1024,
        ),
    )(x, w1t, b1_row, w1_eff)


def reference_forward(x, w1, b1, w2, b2=0.0):
    """Pure-JAX reference using autodiff, mirroring the PyTorch module."""
    def hamiltonian_sum(xi):
        z = jnp.tanh(xi @ w1.T + b1)
        return jnp.sum(z @ w2.reshape(-1, 1) + b2)

    grad = jax.grad(hamiltonian_sum)(x)
    return x + 0.05 * grad


if __name__ == "__main__":
    input_dim, hidden_dim = 3, 64

    key = jax.random.PRNGKey(0)
    kx, k1, k2, k3, kx2, kx3 = jax.random.split(key, 6)

    # Deterministic PyTorch-style uniform fan-in init.
    bound1 = 1.0 / (input_dim ** 0.5)
    bound2 = 1.0 / (hidden_dim ** 0.5)
    w1 = jax.random.uniform(k1, (hidden_dim, input_dim), jnp.float32, -bound1, bound1)
    b1 = jax.random.uniform(k2, (hidden_dim,), jnp.float32, -bound1, bound1)
    w2 = jax.random.uniform(k3, (1, hidden_dim), jnp.float32, -bound2, bound2)
    # b2 of the hamiltonian head has zero input-gradient and does not affect the output.

    # Tolerance note: with the usual multi-pass f32 MXU path the error is <1e-5;
    # 1e-3 also covers a worst-case single-bf16-pass lowering of the f32 matmuls.
    TOL = 1e-3

    # Case 1: the module's toy batch (B=8) -> a single, partially-filled block.
    x = jax.random.normal(kx, (8, input_dim), jnp.float32)
    out = jax.block_until_ready(simple_hnn_forward(x, w1, b1, w2))
    ref = reference_forward(x, w1, b1, w2)
    assert out.shape == x.shape
    assert jnp.allclose(out, ref, atol=TOL, rtol=TOL), float(jnp.max(jnp.abs(out - ref)))

    # Case 2: default tile picker -> 2 grid steps (megacore-friendly), ragged edge.
    x2 = jax.random.normal(kx2, (1000, input_dim), jnp.float32)
    out2 = jax.block_until_ready(simple_hnn_forward(x2, w1, b1, w2))
    ref2 = reference_forward(x2, w1, b1, w2)
    assert out2.shape == x2.shape
    assert jnp.allclose(out2, ref2, atol=TOL, rtol=TOL), float(jnp.max(jnp.abs(out2 - ref2)))

    # Case 3: explicit small tile, batch not a multiple of the tile.
    x3 = jax.random.normal(kx3, (300, input_dim), jnp.float32)
    out3 = jax.block_until_ready(simple_hnn_forward(x3, w1, b1, w2, tm=128))
    ref3 = reference_forward(x3, w1, b1, w2)
    assert out3.shape == x3.shape
    assert jnp.allclose(out3, ref3, atol=TOL, rtol=TOL), float(jnp.max(jnp.abs(out3 - ref3)))

    print("KERNEL_OK")
</pallas_src>

<mosaic_0001>
module attributes {stable_mosaic.version = 11 : i64} {
  func.func @hnn_kernel(%arg0: i32, %arg1: memref<128x3xf32, #tpu.memory_space<vmem>>, %arg2: memref<3x64xf32, #tpu.memory_space<vmem>>, %arg3: memref<1x64xf32, #tpu.memory_space<vmem>>, %arg4: memref<64x3xf32, #tpu.memory_space<vmem>>, %arg5: memref<128x3xf32, #tpu.memory_space<vmem>>) attributes {dimension_semantics = [#tpu.dimension_semantics<parallel>], iteration_bounds = array<i64: 1>, scalar_prefetch = 0 : i64, scratch_operands = 0 : i64, tpu.core_type = #tpu.core_type<tc>, window_params = [{transform_indices = @transform_0, window_bounds = array<i64: 128, 3>}, {pipeline_mode = #tpu.pipeline_mode<synchronous>, transform_indices = @transform_1, window_bounds = array<i64: 3, 64>}, {pipeline_mode = #tpu.pipeline_mode<synchronous>, transform_indices = @transform_2, window_bounds = array<i64: 1, 64>}, {pipeline_mode = #tpu.pipeline_mode<synchronous>, transform_indices = @transform_3, window_bounds = array<i64: 64, 3>}, {transform_indices = @transform_4, window_bounds = array<i64: 128, 3>}]} {
    %c0 = arith.constant 0 : index
    %c0_0 = arith.constant 0 : index
    %0 = vector.load %arg1[%c0, %c0_0] : memref<128x3xf32, #tpu.memory_space<vmem>>, vector<128x3xf32>
    %c0_1 = arith.constant 0 : index
    %c0_2 = arith.constant 0 : index
    %1 = vector.load %arg2[%c0_1, %c0_2] : memref<3x64xf32, #tpu.memory_space<vmem>>, vector<3x64xf32>
    %cst = arith.constant dense<0.000000e+00> : vector<128x64xf32>
    %2 = tpu.matmul %0, %1, %cst {dimension_numbers = #tpu.dot_dimension_numbers<[1], [0], [0], [1], [0, 0, 1, 1], [], []>} : vector<128x3xf32>, vector<3x64xf32>, vector<128x64xf32> -> vector<128x64xf32>
    %c0_3 = arith.constant 0 : index
    %c0_4 = arith.constant 0 : index
    %3 = vector.load %arg3[%c0_3, %c0_4] : memref<1x64xf32, #tpu.memory_space<vmem>>, vector<1x64xf32>
    %4 = vector.broadcast %3 : vector<1x64xf32> to vector<128x64xf32>
    %5 = arith.addf %2, %4 : vector<128x64xf32>
    %6 = math.tanh %5 : vector<128x64xf32>
    %7 = arith.mulf %6, %6 : vector<128x64xf32>
    %cst_5 = arith.constant 1.000000e+00 : f32
    %8 = vector.broadcast %cst_5 : f32 to vector<128x64xf32>
    %9 = arith.subf %8, %7 : vector<128x64xf32>
    %c0_6 = arith.constant 0 : index
    %c0_7 = arith.constant 0 : index
    %10 = vector.load %arg4[%c0_6, %c0_7] : memref<64x3xf32, #tpu.memory_space<vmem>>, vector<64x3xf32>
    %cst_8 = arith.constant dense<0.000000e+00> : vector<128x3xf32>
    %11 = tpu.matmul %9, %10, %cst_8 {dimension_numbers = #tpu.dot_dimension_numbers<[1], [0], [0], [1], [0, 0, 1, 1], [], []>} : vector<128x64xf32>, vector<64x3xf32>, vector<128x3xf32> -> vector<128x3xf32>
    %12 = arith.addf %0, %11 : vector<128x3xf32>
    %c0_9 = arith.constant 0 : index
    %c0_10 = arith.constant 0 : index
    %13 = vector.load %arg5[%c0_9, %c0_10] : memref<128x3xf32, #tpu.memory_space<vmem>>, vector<128x3xf32>
    tpu.vector_store %arg5[%c0_9, %c0_10], %12 {strides = array<i32>} : memref<128x3xf32, #tpu.memory_space<vmem>>, vector<128x3xf32>,
    return
  }
  func.func @transform_0(%arg0: i32) -> (i32, i32) {
    %c0_i32 = arith.constant 0 : i32
    %c0_i32_0 = arith.constant 0 : i32
    return %arg0, %c0_i32 : i32, i32
  }
  func.func @transform_1(%arg0: i32) -> (i32, i32) {
    %c0_i32 = arith.constant 0 : i32
    %c0_i32_0 = arith.constant 0 : i32
    %c0_i32_1 = arith.constant 0 : i32
    return %c0_i32, %c0_i32_0 : i32, i32
  }
  func.func @transform_2(%arg0: i32) -> (i32, i32) {
    %c0_i32 = arith.constant 0 : i32
    %c0_i32_0 = arith.constant 0 : i32
    %c0_i32_1 = arith.constant 0 : i32
    return %c0_i32, %c0_i32_0 : i32, i32
  }
  func.func @transform_3(%arg0: i32) -> (i32, i32) {
    %c0_i32 = arith.constant 0 : i32
    %c0_i32_0 = arith.constant 0 : i32
    %c0_i32_1 = arith.constant 0 : i32
    return %c0_i32, %c0_i32_0 : i32, i32
  }
  func.func @transform_4(%arg0: i32) -> (i32, i32) {
    %c0_i32 = arith.constant 0 : i32
    %c0_i32_0 = arith.constant 0 : i32
    return %arg0, %c0_i32 : i32, i32
  }
}

</mosaic_0001>

<llo_original>
// kernel: tpu_custom_call.1
$region0: #{tpu_custom_call.1}
  #allocation0 [shape = 'u32[]', space=smem, size = 0x4, offset = 0x4, fixed_abs, tag = 'smem constant byte address 0x4 - core index']
  #allocation1 [shape = 'u32[144,128]{1,0:T(1,128)}', space=vmem, size = 0x12000, scoped, tag = 'internal scratch']
  %s0 = inlined_call_operand.vmem [shape: f32[8,3], index: 0, kind: input, shape index: {}]
  %s1 = inlined_call_operand.vmem [shape: f32[3,64], index: 1, kind: input, shape index: {}]
  %s2 = inlined_call_operand.vmem [shape: f32[1,64], index: 2, kind: input, shape index: {}]
  %s3 = inlined_call_operand.vmem [shape: f32[64,3], index: 3, kind: input, shape index: {}]
  %s4 = inlined_call_operand.vmem [shape: f32[8,3], index: 4, kind: output, shape index: {}]
  %s5 = sld [smem:[#allocation0]]
  $region60: #{tpu_custom_call.1} parent=0
    _
  %s7 = ssub.s32 1, %s5
  %s8 = scalar_select 0, %s7, %s5
  $region1: #{tpu_custom_call.1} parent=0
    #allocation2 [shape = 'u8[65536]{0}', space=vmem, size = 0x10000, scoped, tag = 'output window, operand 0, single buffered']
    // Predicated region
    $region2: #{tpu_custom_call.1} parent=1 // pred_check
      _
    $region3: #{tpu_custom_call.1} parent=1 // pred_check_branch
      %10 = sbr.rel (0) target = $region5
    $region4: #{tpu_custom_call.1} parent=1 // pred_region
      _
    $region5: #{tpu_custom_call.1} parent=1 // pred_fallthru
      _
    // Predicated region
    $region6: #{tpu_custom_call.1} parent=1 // pred_check
      _
    $region7: #{tpu_custom_call.1} parent=1 // pred_check_branch
      %12 = sbr.rel (0) target = $region9
    $region8: #{tpu_custom_call.1} parent=1 // pred_region
      _
    $region9: #{tpu_custom_call.1} parent=1 // pred_fallthru
      _
    // Predicated region
    $region10: #{tpu_custom_call.1} parent=1 // pred_check
      _
    $region11: #{tpu_custom_call.1} parent=1 // pred_check_branch
      %14 = sbr.rel (0) target = $region13
    $region12: #{tpu_custom_call.1} parent=1 // pred_region
      _
    $region13: #{tpu_custom_call.1} parent=1 // pred_fallthru
      _
    // Predicated region
    $region14: #{tpu_custom_call.1} parent=1 // pred_check
      _
    $region15: #{tpu_custom_call.1} parent=1 // pred_check_branch
      %16 = sbr.rel (0) target = $region17
    $region16: #{tpu_custom_call.1} parent=1 // pred_region
      _
    $region17: #{tpu_custom_call.1} parent=1 // pred_fallthru
      _
    %v17 = vld [vmem:[%s0] sm:$0xff]
    %v18 = vld [vmem:[%s0 + $0x8] sm:$0xff]
    %v19 = vld [vmem:[%s0 + $0x10] sm:$0xff]
    %v20 = vld [vmem:[%s0 + $0x18] sm:$0xff]
    %v21 = vld [vmem:[%s0 + $0x20] sm:$0xff]
    %v22 = vld [vmem:[%s0 + $0x28] sm:$0xff]
    %v23 = vld [vmem:[%s0 + $0x30] sm:$0xff]
    %v24 = vld [vmem:[%s0 + $0x38] sm:$0xff]
    %v25 = vld [vmem:[%s0 + $0x40] sm:$0xff]
    %v26 = vld [vmem:[%s0 + $0x48] sm:$0xff]
    %v27 = vld [vmem:[%s0 + $0x50] sm:$0xff]
    %v28 = vld [vmem:[%s0 + $0x58] sm:$0xff]
    %v29 = vld [vmem:[%s0 + $0x60] sm:$0xff]
    %v30 = vld [vmem:[%s0 + $0x68] sm:$0xff]
    %v31 = vld [vmem:[%s0 + $0x70] sm:$0xff]
    %v32 = vld [vmem:[%s0 + $0x78] sm:$0xff]
    %v33 = vld [vmem:[%s1] sm:$0x7]
    %v34 = vld [vmem:[%s2] sm:$0x1]
    %v36 = vlaneseq
    %v37 = vshrl.u32 %v36, 7
    %v38 = vsub.s32 0, %v37
    %v39 = vrot.slane %v34, %v38
    %vm41 = vcmask 23552
    %v43 = vsel %vm41, %v17, 0
    %v46 = vsel %vm41, %v18, 0
    %v49 = vsel %vm41, %v19, 0
    %v52 = vsel %vm41, %v20, 0
    %v55 = vsel %vm41, %v21, 0
    %v58 = vsel %vm41, %v22, 0
    %v61 = vsel %vm41, %v23, 0
    %v64 = vsel %vm41, %v24, 0
    %v67 = vsel %vm41, %v25, 0
    %v70 = vsel %vm41, %v26, 0
    %v73 = vsel %vm41, %v27, 0
    %v76 = vsel %vm41, %v28, 0
    %v79 = vsel %vm41, %v29, 0
    %v82 = vsel %vm41, %v30, 0
    %v85 = vsel %vm41, %v31, 0
    %v88 = vsel %vm41, %v32, 0
    %vm90 = vcmask 1042432
    %v92 = vsel %vm90, %v33, 0
    %94 = vmatprep.subr.mxu0 0.0
    %95 = vmatpush1.msra.mxu0 0.0
    %96 = vmatprep.subr.mxu0 0.0
    %97 = vmatpush1.msra.mxu0 0.0
    %98 = vmatprep.subr.mxu0 0.0
    %99 = vmatpush1.msra.mxu0 0.0
    %100 = vmatprep.subr.mxu0 0.0
    %101 = vmatpush1.msra.mxu0 0.0
    %102 = vmatprep.subr.mxu0 0.0
    %103 = vmatpush1.msra.mxu0 0.0
    %104 = vmatprep.subr.mxu0 0.0
    %105 = vmatpush1.msra.mxu0 0.0
    %106 = vmatprep.subr.mxu0 0.0
    %107 = vmatpush1.msra.mxu0 0.0
    %108 = vmatprep.subr.mxu0 0.0
    %109 = vmatpush1.msra.mxu0 0.0
    %110 = vmatprep.subr.mxu0 0.0
    %111 = vmatpush1.msra.mxu0 0.0
    %112 = vmatprep.subr.mxu0 0.0
    %113 = vmatpush1.msra.mxu0 0.0
    %114 = vmatprep.subr.mxu0 0.0
    %115 = vmatpush1.msra.mxu0 0.0
    %116 = vmatprep.subr.mxu0 0.0
    %117 = vmatpush1.msra.mxu0 0.0
    %118 = vmatprep.subr.mxu0 0.0
    %119 = vmatpush1.msra.mxu0 0.0
    %120 = vmatprep.subr.mxu0 0.0
    %121 = vmatpush1.msra.mxu0 0.0
    %122 = vmatprep.subr.mxu0 0.0
    %123 = vmatpush1.msra.mxu0 0.0
    %124 = vmatprep.subr.mxu0 0.0
    %125 = vmatpush1.msra.mxu0 %v92
    %126 = vmatprep.subr.mxu0 0.0
    %127 = vmatpush2.msra.mxu0 0.0
    %128 = vmatprep.subr.mxu0 0.0
    %129 = vmatpush2.msra.mxu0 0.0
    %130 = vmatprep.subr.mxu0 0.0
    %131 = vmatpush2.msra.mxu0 0.0
    %132 = vmatprep.subr.mxu0 0.0
    %133 = vmatpush2.msra.mxu0 0.0
    %134 = vmatprep.subr.mxu0 0.0
    %135 = vmatpush2.msra.mxu0 0.0
    %136 = vmatprep.subr.mxu0 0.0
    %137 = vmatpush2.msra.mxu0 0.0
    %138 = vmatprep.subr.mxu0 0.0
    %139 = vmatpush2.msra.mxu0 0.0
    %140 = vmatprep.subr.mxu0 0.0
    %141 = vmatpush2.msra.mxu0 0.0
    %142 = vmatprep.subr.mxu0 0.0
    %143 = vmatpush2.msra.mxu0 0.0
    %144 = vmatprep.subr.mxu0 0.0
    %145 = vmatpush2.msra.mxu0 0.0
    %146 = vmatprep.subr.mxu0 0.0
    %147 = vmatpush2.msra.mxu0 0.0
    %148 = vmatprep.subr.mxu0 0.0
    %149 = vmatpush2.msra.mxu0 0.0
    %150 = vmatprep.subr.mxu0 0.0
    %151 = vmatpush2.msra.mxu0 0.0
    %152 = vmatprep.subr.mxu0 0.0
    %153 = vmatpush2.msra.mxu0 0.0
    %154 = vmatprep.subr.mxu0 0.0
    %155 = vmatpush2.msra.mxu0 0.0
    %156 = vmatprep.subr.mxu0 0.0
    %157 = vmatpush2.msra.mxu0 0.0
    %158 = vmatprep.mubr.f32.mxu0 0.0
    %159 = vmatmul.mubr.f32.gmra.mxu0 %v43
    %v160 = vpop.f32.mrf.mxu0
    %v161 = vadd.f32 %v39, %v160
    %v162 = vpop.f32.mrf.mxu0
    %163 = vmatprep.mubr.f32.mxu0 0.0
    %164 = vmatmul.mubr.f32.gmra.mxu0 %v46
    %v165 = vpop.f32.mrf.mxu0
    %v166 = vadd.f32 %v39, %v165
    %v167 = vpop.f32.mrf.mxu0
    %168 = vmatprep.mubr.f32.mxu0 0.0
    %169 = vmatmul.mubr.f32.gmra.mxu0 %v49
    %v170 = vpop.f32.mrf.mxu0
    %v171 = vadd.f32 %v39, %v170
    %v172 = vpop.f32.mrf.mxu0
    %173 = vmatprep.mubr.f32.mxu0 0.0
    %174 = vmatmul.mubr.f32.gmra.mxu0 %v52
    %v175 = vpop.f32.mrf.mxu0
    %v176 = vadd.f32 %v39, %v175
    %v177 = vpop.f32.mrf.mxu0
    %178 = vmatprep.mubr.f32.mxu0 0.0
    %179 = vmatmul.mubr.f32.gmra.mxu0 %v55
    %v180 = vpop.f32.mrf.mxu0
    %v181 = vadd.f32 %v39, %v180
    %v182 = vpop.f32.mrf.mxu0
    %183 = vmatprep.mubr.f32.mxu0 0.0
    %184 = vmatmul.mubr.f32.gmra.mxu0 %v58
    %v185 = vpop.f32.mrf.mxu0
    %v186 = vadd.f32 %v39, %v185
    %v187 = vpop.f32.mrf.mxu0
    %188 = vmatprep.mubr.f32.mxu0 0.0
    %189 = vmatmul.mubr.f32.gmra.mxu0 %v61
    %v190 = vpop.f32.mrf.mxu0
    %v191 = vadd.f32 %v39, %v190
    %v192 = vpop.f32.mrf.mxu0
    %193 = vmatprep.mubr.f32.mxu0 0.0
    %194 = vmatmul.mubr.f32.gmra.mxu0 %v64
    %v195 = vpop.f32.mrf.mxu0
    %v196 = vadd.f32 %v39, %v195
    %v197 = vpop.f32.mrf.mxu0
    %198 = vmatprep.mubr.f32.mxu0 0.0
    %199 = vmatmul.mubr.f32.gmra.mxu0 %v67
    %v200 = vpop.f32.mrf.mxu0
    %v201 = vadd.f32 %v39, %v200
    %v202 = vpop.f32.mrf.mxu0
    %203 = vmatprep.mubr.f32.mxu0 0.0
    %204 = vmatmul.mubr.f32.gmra.mxu0 %v70
    %v205 = vpop.f32.mrf.mxu0
    %v206 = vadd.f32 %v39, %v205
    %v207 = vpop.f32.mrf.mxu0
    %208 = vmatprep.mubr.f32.mxu0 0.0
    %209 = vmatmul.mubr.f32.gmra.mxu0 %v73
    %v210 = vpop.f32.mrf.mxu0
    %v211 = vadd.f32 %v39, %v210
    %v212 = vpop.f32.mrf.mxu0
    %213 = vmatprep.mubr.f32.mxu0 0.0
    %214 = vmatmul.mubr.f32.gmra.mxu0 %v76
    %v215 = vpop.f32.mrf.mxu0
    %v216 = vadd.f32 %v39, %v215
    %v217 = vpop.f32.mrf.mxu0
    %218 = vmatprep.mubr.f32.mxu0 0.0
    %219 = vmatmul.mubr.f32.gmra.mxu0 %v79
    %v220 = vpop.f32.mrf.mxu0
    %v221 = vadd.f32 %v39, %v220
    %v222 = vpop.f32.mrf.mxu0
    %223 = vmatprep.mubr.f32.mxu0 0.0
    %224 = vmatmul.mubr.f32.gmra.mxu0 %v82
    %v225 = vpop.f32.mrf.mxu0
    %v226 = vadd.f32 %v39, %v225
    %v227 = vpop.f32.mrf.mxu0
    %228 = vmatprep.mubr.f32.mxu0 0.0
    %229 = vmatmul.mubr.f32.gmra.mxu0 %v85
    %v230 = vpop.f32.mrf.mxu0
    %v231 = vadd.f32 %v39, %v230
    %v232 = vpop.f32.mrf.mxu0
    %233 = vmatprep.mubr.f32.mxu0 0.0
    %234 = vmatmul.mubr.f32.gmra.mxu0 %v88
    %v235 = vpop.f32.mrf.mxu0
    %v236 = vadd.f32 %v39, %v235
    %v237 = vpop.f32.mrf.mxu0
    %238 = vdwg.mxu0
    %v239 = vtanh.pop %v161
    %v240 = vtanh.pop %v166
    %v241 = vtanh.pop %v171
    %v242 = vtanh.pop %v176
    %v243 = vtanh.pop %v181
    %v244 = vtanh.pop %v186
    %v245 = vtanh.pop %v191
    %v246 = vtanh.pop %v196
    %v247 = vtanh.pop %v201
    %v248 = vtanh.pop %v206
    %v249 = vtanh.pop %v211
    %v250 = vtanh.pop %v216
    %v251 = vtanh.pop %v221
    %v252 = vtanh.pop %v226
    %v253 = vtanh.pop %v231
    %v254 = vtanh.pop %v236
    %v255 = vmul.f32 %v239, %v239
    %v256 = vmul.f32 %v240, %v240
    %v257 = vmul.f32 %v241, %v241
    %v258 = vmul.f32 %v242, %v242
    %v259 = vmul.f32 %v243, %v243
    %v260 = vmul.f32 %v244, %v244
    %v261 = vmul.f32 %v245, %v245
    %v262 = vmul.f32 %v246, %v246
    %v263 = vmul.f32 %v247, %v247
    %v264 = vmul.f32 %v248, %v248
    %v265 = vmul.f32 %v249, %v249
    %v266 = vmul.f32 %v250, %v250
    %v267 = vmul.f32 %v251, %v251
    %v268 = vmul.f32 %v252, %v252
    %v269 = vmul.f32 %v253, %v253
    %v270 = vmul.f32 %v254, %v254
    %v271 = vsub.f32 1.0, %v255
    %v272 = vsub.f32 1.0, %v256
    %v273 = vsub.f32 1.0, %v257
    %v274 = vsub.f32 1.0, %v258
    %v275 = vsub.f32 1.0, %v259
    %v276 = vsub.f32 1.0, %v260
    %v277 = vsub.f32 1.0, %v261
    %v278 = vsub.f32 1.0, %v262
    %v279 = vsub.f32 1.0, %v263
    %v280 = vsub.f32 1.0, %v264
    %v281 = vsub.f32 1.0, %v265
    %v282 = vsub.f32 1.0, %v266
    %v283 = vsub.f32 1.0, %v267
    %v284 = vsub.f32 1.0, %v268
    %v285 = vsub.f32 1.0, %v269
    %v286 = vsub.f32 1.0, %v270
    %v287 = vld [vmem:[%s3] sm:$0xff]
    %v288 = vld [vmem:[%s3 + $0x8] sm:$0xff]
    %v289 = vld [vmem:[%s3 + $0x10] sm:$0xff]
    %v290 = vld [vmem:[%s3 + $0x18] sm:$0xff]
    %v291 = vld [vmem:[%s3 + $0x20] sm:$0xff]
    %v292 = vld [vmem:[%s3 + $0x28] sm:$0xff]
    %v293 = vld [vmem:[%s3 + $0x30] sm:$0xff]
    %v294 = vld [vmem:[%s3 + $0x38] sm:$0xff]
    %vm295 = vcmask 523264
    %v297 = vsel %vm295, %v271, 0
    %v300 = vsel %vm295, %v272, 0
    %v303 = vsel %vm295, %v273, 0
    %v306 = vsel %vm295, %v274, 0
    %v309 = vsel %vm295, %v275, 0
    %v312 = vsel %vm295, %v276, 0
    %v315 = vsel %vm295, %v277, 0
    %v318 = vsel %vm295, %v278, 0
    %v321 = vsel %vm295, %v279, 0
    %v324 = vsel %vm295, %v280, 0
    %v327 = vsel %vm295, %v281, 0
    %v330 = vsel %vm295, %v282, 0
    %v333 = vsel %vm295, %v283, 0
    %v336 = vsel %vm295, %v284, 0
    %v339 = vsel %vm295, %v285, 0
    %v342 = vsel %vm295, %v286, 0
    %344 = vmatprep.subr.mxu0 0.0
    %345 = vmatpush1.msra.mxu0 0.0
    %346 = vmatprep.subr.mxu0 0.0
    %347 = vmatpush1.msra.mxu0 0.0
    %348 = vmatprep.subr.mxu0 0.0
    %349 = vmatpush1.msra.mxu0 0.0
    %350 = vmatprep.subr.mxu0 0.0
    %351 = vmatpush1.msra.mxu0 0.0
    %352 = vmatprep.subr.mxu0 0.0
    %353 = vmatpush1.msra.mxu0 0.0
    %354 = vmatprep.subr.mxu0 0.0
    %355 = vmatpush1.msra.mxu0 0.0
    %356 = vmatprep.subr.mxu0 0.0
    %357 = vmatpush1.msra.mxu0 0.0
    %358 = vmatprep.subr.mxu0 0.0
    %359 = vmatpush1.msra.mxu0 0.0
    %360 = vmatprep.subr.mxu0 0.0
    %361 = vmatpush1.msra.mxu0 %v294
    %362 = vmatprep.subr.mxu0 0.0
    %363 = vmatpush1.msra.mxu0 %v293
    %364 = vmatprep.subr.mxu0 0.0
    %365 = vmatpush1.msra.mxu0 %v292
    %366 = vmatprep.subr.mxu0 0.0
    %367 = vmatpush1.msra.mxu0 %v291
    %368 = vmatprep.subr.mxu0 0.0
    %369 = vmatpush1.msra.mxu0 %v290
    %370 = vmatprep.subr.mxu0 0.0
    %371 = vmatpush1.msra.mxu0 %v289
    %372 = vmatprep.subr.mxu0 0.0
    %373 = vmatpush1.msra.mxu0 %v288
    %374 = vmatprep.subr.mxu0 0.0
    %375 = vmatpush1.msra.mxu0 %v287
    %376 = vmatprep.subr.mxu0 0.0
    %377 = vmatpush2.msra.mxu0 0.0
    %378 = vmatprep.subr.mxu0 0.0
    %379 = vmatpush2.msra.mxu0 0.0
    %380 = vmatprep.subr.mxu0 0.0
    %381 = vmatpush2.msra.mxu0 0.0
    %382 = vmatprep.subr.mxu0 0.0
    %383 = vmatpush2.msra.mxu0 0.0
    %384 = vmatprep.subr.mxu0 0.0
    %385 = vmatpush2.msra.mxu0 0.0
    %386 = vmatprep.subr.mxu0 0.0
    %387 = vmatpush2.msra.mxu0 0.0
    %388 = vmatprep.subr.mxu0 0.0
    %389 = vmatpush2.msra.mxu0 0.0
    %390 = vmatprep.subr.mxu0 0.0
    %391 = vmatpush2.msra.mxu0 0.0
    %392 = vmatprep.subr.mxu0 0.0
    %393 = vmatpush2.msra.mxu0 0.0
    %394 = vmatprep.subr.mxu0 0.0
    %395 = vmatpush2.msra.mxu0 0.0
    %396 = vmatprep.subr.mxu0 0.0
    %397 = vmatpush2.msra.mxu0 0.0
    %398 = vmatprep.subr.mxu0 0.0
    %399 = vmatpush2.msra.mxu0 0.0
    %400 = vmatprep.subr.mxu0 0.0
    %401 = vmatpush2.msra.mxu0 0.0
    %402 = vmatprep.subr.mxu0 0.0
    %403 = vmatpush2.msra.mxu0 0.0
    %404 = vmatprep.subr.mxu0 0.0
    %405 = vmatpush2.msra.mxu0 0.0
    %406 = vmatprep.subr.mxu0 0.0
    %407 = vmatpush2.msra.mxu0 0.0
    %408 = vmatprep.mubr.f32.mxu0 0.0
    %409 = vmatmul.mubr.f32.gmra.mxu0 %v297
    %v410 = vpop.f32.mrf.mxu0
    %v411 = vadd.f32 0.0, %v410
    %v412 = vpop.f32.mrf.mxu0
    %413 = vmatprep.mubr.f32.mxu0 0.0
    %414 = vmatmul.mubr.f32.gmra.mxu0 %v300
    %v415 = vpop.f32.mrf.mxu0
    %v416 = vadd.f32 0.0, %v415
    %v417 = vpop.f32.mrf.mxu0
    %418 = vmatprep.mubr.f32.mxu0 0.0
    %419 = vmatmul.mubr.f32.gmra.mxu0 %v303
    %v420 = vpop.f32.mrf.mxu0
    %v421 = vadd.f32 0.0, %v420
    %v422 = vpop.f32.mrf.mxu0
    %423 = vmatprep.mubr.f32.mxu0 0.0
    %424 = vmatmul.mubr.f32.gmra.mxu0 %v306
    %v425 = vpop.f32.mrf.mxu0
    %v426 = vadd.f32 0.0, %v425
    %v427 = vpop.f32.mrf.mxu0
    %428 = vmatprep.mubr.f32.mxu0 0.0
    %429 = vmatmul.mubr.f32.gmra.mxu0 %v309
    %v430 = vpop.f32.mrf.mxu0
    %v431 = vadd.f32 0.0, %v430
    %v432 = vpop.f32.mrf.mxu0
    %433 = vmatprep.mubr.f32.mxu0 0.0
    %434 = vmatmul.mubr.f32.gmra.mxu0 %v312
    %v435 = vpop.f32.mrf.mxu0
    %v436 = vadd.f32 0.0, %v435
    %v437 = vpop.f32.mrf.mxu0
    %438 = vmatprep.mubr.f32.mxu0 0.0
    %439 = vmatmul.mubr.f32.gmra.mxu0 %v315
    %v440 = vpop.f32.mrf.mxu0
    %v441 = vadd.f32 0.0, %v440
    %v442 = vpop.f32.mrf.mxu0
    %443 = vmatprep.mubr.f32.mxu0 0.0
    %444 = vmatmul.mubr.f32.gmra.mxu0 %v318
    %v445 = vpop.f32.mrf.mxu0
    %v446 = vadd.f32 0.0, %v445
    %v447 = vpop.f32.mrf.mxu0
    %448 = vmatprep.mubr.f32.mxu0 0.0
    %449 = vmatmul.mubr.f32.gmra.mxu0 %v321
    %v450 = vpop.f32.mrf.mxu0
    %v451 = vadd.f32 0.0, %v450
    %v452 = vpop.f32.mrf.mxu0
    %453 = vmatprep.mubr.f32.mxu0 0.0
    %454 = vmatmul.mubr.f32.gmra.mxu0 %v324
    %v455 = vpop.f32.mrf.mxu0
    %v456 = vadd.f32 0.0, %v455
    %v457 = vpop.f32.mrf.mxu0
    %458 = vmatprep.mubr.f32.mxu0 0.0
    %459 = vmatmul.mubr.f32.gmra.mxu0 %v327
    %v460 = vpop.f32.mrf.mxu0
    %v461 = vadd.f32 0.0, %v460
    %v462 = vpop.f32.mrf.mxu0
    %463 = vmatprep.mubr.f32.mxu0 0.0
    %464 = vmatmul.mubr.f32.gmra.mxu0 %v330
    %v465 = vpop.f32.mrf.mxu0
    %v466 = vadd.f32 0.0, %v465
    %v467 = vpop.f32.mrf.mxu0
    %468 = vmatprep.mubr.f32.mxu0 0.0
    %469 = vmatmul.mubr.f32.gmra.mxu0 %v333
    %v470 = vpop.f32.mrf.mxu0
    %v471 = vadd.f32 0.0, %v470
    %v472 = vpop.f32.mrf.mxu0
    %473 = vmatprep.mubr.f32.mxu0 0.0
    %474 = vmatmul.mubr.f32.gmra.mxu0 %v336
    %v475 = vpop.f32.mrf.mxu0
    %v476 = vadd.f32 0.0, %v475
    %v477 = vpop.f32.mrf.mxu0
    %478 = vmatprep.mubr.f32.mxu0 0.0
    %479 = vmatmul.mubr.f32.gmra.mxu0 %v339
    %v480 = vpop.f32.mrf.mxu0
    %v481 = vadd.f32 0.0, %v480
    %v482 = vpop.f32.mrf.mxu0
    %483 = vmatprep.mubr.f32.mxu0 0.0
    %484 = vmatmul.mubr.f32.gmra.mxu0 %v342
    %v485 = vpop.f32.mrf.mxu0
    %v486 = vadd.f32 0.0, %v485
    %v487 = vpop.f32.mrf.mxu0
    %488 = vdwg.mxu0
    %v489 = vadd.f32 %v17, %v411
    %v490 = vadd.f32 %v18, %v416
    %v491 = vadd.f32 %v19, %v421
    %v492 = vadd.f32 %v20, %v426
    %v493 = vadd.f32 %v21, %v431
    %v494 = vadd.f32 %v22, %v436
    %v495 = vadd.f32 %v23, %v441
    %v496 = vadd.f32 %v24, %v446
    %v497 = vadd.f32 %v25, %v451
    %v498 = vadd.f32 %v26, %v456
    %v499 = vadd.f32 %v27, %v461
    %v500 = vadd.f32 %v28, %v466
    %v501 = vadd.f32 %v29, %v471
    %v502 = vadd.f32 %v30, %v476
    %v503 = vadd.f32 %v31, %v481
    %v504 = vadd.f32 %v32, %v486
    %505 = vst.msk [vmem:[#allocation2] sm:$0xff] %vm41, %v489
    %506 = vst.msk [vmem:[#allocation2 + $0x8] sm:$0xff] %vm41, %v490
    %507 = vst.msk [vmem:[#allocation2 + $0x10] sm:$0xff] %vm41, %v491
    %508 = vst.msk [vmem:[#allocation2 + $0x18] sm:$0xff] %vm41, %v492
    %509 = vst.msk [vmem:[#allocation2 + $0x20] sm:$0xff] %vm41, %v493
    %510 = vst.msk [vmem:[#allocation2 + $0x28] sm:$0xff] %vm41, %v494
    %511 = vst.msk [vmem:[#allocation2 + $0x30] sm:$0xff] %vm41, %v495
    %512 = vst.msk [vmem:[#allocation2 + $0x38] sm:$0xff] %vm41, %v496
    %513 = vst.msk [vmem:[#allocation2 + $0x40] sm:$0xff] %vm41, %v497
    %514 = vst.msk [vmem:[#allocation2 + $0x48] sm:$0xff] %vm41, %v498
    %515 = vst.msk [vmem:[#allocation2 + $0x50] sm:$0xff] %vm41, %v499
    %516 = vst.msk [vmem:[#allocation2 + $0x58] sm:$0xff] %vm41, %v500
    %517 = vst.msk [vmem:[#allocation2 + $0x60] sm:$0xff] %vm41, %v501
    %518 = vst.msk [vmem:[#allocation2 + $0x68] sm:$0xff] %vm41, %v502
    %519 = vst.msk [vmem:[#allocation2 + $0x70] sm:$0xff] %vm41, %v503
    %520 = vst.msk [vmem:[#allocation2 + $0x78] sm:$0xff] %vm41, %v504
    // Predicated region
    $region18: #{tpu_custom_call.1} parent=1 // pred_check
      _
    $region19: #{tpu_custom_call.1} parent=1 // pred_check_branch
      %522 = sbr.rel (0) target = $region21
    $region20: #{tpu_custom_call.1} parent=1 // pred_region
      // Predicated region
      $region22: #{tpu_custom_call.1} parent=20 // pred_check
        _
      $region23: #{tpu_custom_call.1} parent=20 // pred_check_branch
        %524 = sbr.rel (0) target = $region25
      $region24: #{tpu_custom_call.1} parent=20 // pred_region
        // Predicated region
        $region26: #{tpu_custom_call.1} parent=24 // pred_check
          _
        $region27: #{tpu_custom_call.1} parent=24 // pred_check_branch
          %526 = sbr.rel (0) target = $region29
        $region28: #{tpu_custom_call.1} parent=24 // pred_region
          // Predicated region
          $region41: #{tpu_custom_call.1} parent=28 // pred_check
            _
          $region42: #{tpu_custom_call.1} parent=28 // pred_check_branch
            %542 = sbr.rel (0) target = $region44
          $region43: #{tpu_custom_call.1} parent=28 // pred_region
            loop: start=0, step=1, limit=1
            $region45: #{tpu_custom_call.1} parent=43 // loop_pre_header
              _
            $region46: #{tpu_custom_call.1} parent=43 // loop_header
              %s544 = sphi 0, %s548
              %p545 = scmp.ge.s32.totalorder %s544, 1
              %s549 = sphi [#allocation2], [#allocation2]
              %s550 = sphi %s4, %s4
            $region47: #{tpu_custom_call.1} parent=43 // loop_header_branch
              %547 = sbr.rel (%p545) target = $region51
            $region48: #{tpu_custom_call.1} parent=43 // loop_body
              %v551 = vld [vmem:[%s549] sm:$0xff]
              %552 = vst [vmem:[%s550] sm:$0xff] %v551
            $region49: #{tpu_custom_call.1} parent=43 // loop_footer
              %s548 = sadd.s32 1, %s544
            $region50: #{tpu_custom_call.1} parent=43 // loop_footer_branch
              %543 = sbr.rel target = $region46
            $region51: #{tpu_custom_call.1} parent=43 // loop_exit
              _
          $region44: #{tpu_custom_call.1} parent=28 // pred_fallthru
            _
          // Predicated region
          $region52: #{tpu_custom_call.1} parent=28 // pred_check
            _
          $region53: #{tpu_custom_call.1} parent=28 // pred_check_branch
            %554 = sbr.rel target = $region55
          $region54: #{tpu_custom_call.1} parent=28 // pred_region
            _
          $region55: #{tpu_custom_call.1} parent=28 // pred_fallthru
            _
        $region29: #{tpu_custom_call.1} parent=24 // pred_fallthru
          _
        // Predicated region
        $region30: #{tpu_custom_call.1} parent=24 // pred_check
          _
        $region31: #{tpu_custom_call.1} parent=24 // pred_check_branch
          %528 = sbr.rel target = $region33
        $region32: #{tpu_custom_call.1} parent=24 // pred_region
          %s530 = ssub.s32 256, 1
          loop: start=0, step=1, limit=1
          $region34: #{tpu_custom_call.1} parent=32 // loop_pre_header
            _
          $region35: #{tpu_custom_call.1} parent=32 // loop_header
            %s532 = sphi 0, %s536
            %p533 = scmp.ge.s32.totalorder %s532, 1
            %s537 = sphi [#allocation2], [#allocation2]
            %s538 = sphi %s4, %s4
          $region36: #{tpu_custom_call.1} parent=32 // loop_header_branch
            %535 = sbr.rel (%p533) target = $region40
          $region37: #{tpu_custom_call.1} parent=32 // loop_body
            %v539 = vld [vmem:[%s537] sm:%s530]
            %540 = vst [vmem:[%s538] sm:%s530] %v539
          $region38: #{tpu_custom_call.1} parent=32 // loop_footer
            %s536 = sadd.s32 1, %s532
          $region39: #{tpu_custom_call.1} parent=32 // loop_footer_branch
            %531 = sbr.rel target = $region35
          $region40: #{tpu_custom_call.1} parent=32 // loop_exit
            _
        $region33: #{tpu_custom_call.1} parent=24 // pred_fallthru
          _
      $region25: #{tpu_custom_call.1} parent=20 // pred_fallthru
        _
      %555 = vnop
    $region21: #{tpu_custom_call.1} parent=1 // pred_fallthru
      _
    // Predicated region
    $region56: #{tpu_custom_call.1} parent=1 // pred_check
      _
    $region57: #{tpu_custom_call.1} parent=1 // pred_check_branch
      %557 = sbr.rel (0) target = $region59
    $region58: #{tpu_custom_call.1} parent=1 // pred_region
      _
    $region59: #{tpu_custom_call.1} parent=1 // pred_fallthru
      _

</llo_original>
